<compile_context>
chip_gen: v6e
topology: v6e:2x2x1
jax: 0.10.0
libtpu: 0.0.40
codegen_flags: <defaults>
</compile_context>

<pallas_src>
import functools

import jax
import jax.numpy as jnp
from jax.experimental import pallas as pl
from jax.experimental.pallas import tpu as pltpu


# Cross-generation VMEM budget: 2 inputs x 2 pipeline buffers of f32 tiles must stay
# under this (fits v7x's 64 MiB physical with headroom; we raise v5e's 16 MiB default
# scoped limit via vmem_limit_bytes below).
_VMEM_INPUT_BUDGET = 24 * 1024 * 1024
_VMEM_LIMIT_BYTES = 32 * 1024 * 1024
_SMALL_PROBLEM_BYTES = 256 * 1024  # below this, XLA's fused reduction wins


def _round_up(x, m):
    return ((x + m - 1) // m) * m


def _pick_block_n(block_n, n_rows, c_block):
    """Largest multiple-of-8 row tile <= block_n that fits the input VMEM budget."""
    bn = min(block_n, _round_up(n_rows, 8))
    bn = max(8, (bn // 8) * 8)
    # 16 = 2 inputs * 2 pipeline buffers * 4 bytes (f32).
    while bn > 8 and 16 * bn * c_block > _VMEM_INPUT_BUDGET:
        bn = max(8, ((bn // 2) // 8) * 8)
    return bn


def _pad_classes(outputs, targets, c_pad):
    """Pad class dim: logits with most-negative finite (keeps lse), targets with 0."""
    n, c = outputs.shape
    if c_pad == c:
        return outputs, targets
    neg = float(jnp.finfo(outputs.dtype).min) if jnp.issubdtype(
        outputs.dtype, jnp.floating) else -1e30
    outputs = jnp.pad(outputs, ((0, 0), (0, c_pad - c)), constant_values=neg)
    targets = jnp.pad(targets, ((0, 0), (0, c_pad - c)), constant_values=0)
    return outputs, targets


# ---------------------------------------------------------------------------
# Kernel 1: single pass over the full (padded) class dim per row tile.
# ---------------------------------------------------------------------------
def _ce_single_pass_kernel(x_ref, t_ref, loss_ref):
    x = x_ref[...].astype(jnp.float32)
    t = t_ref[...].astype(jnp.float32)

    # Row-wise logsumexp (lane-axis reductions -> XLU; exp/log -> EUP).
    m = jnp.max(x, axis=1, keepdims=True)
    lse = m + jnp.log(jnp.sum(jnp.exp(x - m), axis=1, keepdims=True))

    # loss = lse * sum(t) - sum(x * t)  (no materialized log_softmax tile).
    sx = jnp.sum(x * t, axis=1, keepdims=True)
    st = jnp.sum(t, axis=1, keepdims=True)
    loss_ref[...] = (lse * st - sx).astype(loss_ref.dtype)


def _ce_soft_label_single_pass(outputs, targets, *, block_n):
    n, c = outputs.shape
    c_pad = _round_up(c, 128)
    outputs, targets = _pad_classes(outputs, targets, c_pad)

    bn = _pick_block_n(block_n, n, c_pad)
    grid = (pl.cdiv(n, bn),)

    loss2d = pl.pallas_call(
        _ce_single_pass_kernel,
        out_shape=jax.ShapeDtypeStruct((n, 1), jnp.float32),
        grid=grid,
        in_specs=[
            pl.BlockSpec((bn, c_pad), lambda i: (i, 0)),
            pl.BlockSpec((bn, c_pad), lambda i: (i, 0)),
        ],
        out_specs=pl.BlockSpec((bn, 1), lambda i: (i, 0)),
        compiler_params=pltpu.CompilerParams(
            dimension_semantics=("parallel",),
            vmem_limit_bytes=_VMEM_LIMIT_BYTES,
        ),
    )(outputs, targets)
    return loss2d[:, 0]


# ---------------------------------------------------------------------------
# Kernel 2: class-tiled online logsumexp for vocab-scale C.
# Grid = (row tiles [parallel], class tiles [arbitrary, last]).
# ---------------------------------------------------------------------------
def _ce_class_tiled_kernel(x_ref, t_ref, loss_ref, m_sc, s_sc, sx_sc, st_sc):
    k = pl.program_id(1)

    @pl.when(k == 0)
    def _():
        m_sc[...] = jnp.full_like(m_sc, -jnp.inf)
        s_sc[...] = jnp.zeros_like(s_sc)
        sx_sc[...] = jnp.zeros_like(sx_sc)
        st_sc[...] = jnp.zeros_like(st_sc)

    x = x_ref[...].astype(jnp.float32)
    t = t_ref[...].astype(jnp.float32)

    m_prev = m_sc[...]
    m_new = jnp.maximum(m_prev, jnp.max(x, axis=1, keepdims=True))
    s_sc[...] = (s_sc[...] * jnp.exp(m_prev - m_new)
                 + jnp.sum(jnp.exp(x - m_new), axis=1, keepdims=True))
    sx_sc[...] = sx_sc[...] + jnp.sum(x * t, axis=1, keepdims=True)
    st_sc[...] = st_sc[...] + jnp.sum(t, axis=1, keepdims=True)
    m_sc[...] = m_new

    @pl.when(k == pl.num_programs(1) - 1)
    def _():
        lse = m_sc[...] + jnp.log(s_sc[...])
        loss_ref[...] = (lse * st_sc[...] - sx_sc[...]).astype(loss_ref.dtype)


def _ce_soft_label_class_tiled(outputs, targets, *, block_n, block_c):
    n, c = outputs.shape
    bc = min(_round_up(block_c, 128), _round_up(c, 128))
    c_pad = _round_up(c, bc)
    outputs, targets = _pad_classes(outputs, targets, c_pad)

    bn = _pick_block_n(block_n, n, bc)
    grid = (pl.cdiv(n, bn), c_pad // bc)

    loss2d = pl.pallas_call(
        _ce_class_tiled_kernel,
        out_shape=jax.ShapeDtypeStruct((n, 1), jnp.float32),
        grid=grid,
        in_specs=[
            pl.BlockSpec((bn, bc), lambda i, k: (i, k)),
            pl.BlockSpec((bn, bc), lambda i, k: (i, k)),
        ],
        out_specs=pl.BlockSpec((bn, 1), lambda i, k: (i, 0)),
        scratch_shapes=[pltpu.VMEM((bn, 1), jnp.float32)] * 4,
        compiler_params=pltpu.CompilerParams(
            dimension_semantics=("parallel", "arbitrary"),
            vmem_limit_bytes=_VMEM_LIMIT_BYTES,
        ),
    )(outputs, targets)
    return loss2d[:, 0]


# ---------------------------------------------------------------------------
# Public wrapper (matches CE_Soft_Label.forward: returns per-sample loss_vec).
# ---------------------------------------------------------------------------
def _ce_soft_label_xla(outputs, targets):
    logsm = jax.nn.log_softmax(outputs.astype(jnp.float32), axis=1)
    return -jnp.sum(logsm * targets.astype(jnp.float32), axis=1)


def ce_soft_label(outputs, targets, *, block_n=512, block_c=1024,
                  use_pallas=None, class_tiled=None):
    """Pallas equivalent of CE_Soft_Label.forward.

    Returns loss_vec of shape (N,).  (PyTorch also computes average_loss =
    loss_vec.mean() but returns loss_vec; the mean is cheap caller-side glue.)
    """
    n, c = outputs.shape

    total_bytes = n * c * (outputs.dtype.itemsize + targets.dtype.itemsize)
    if use_pallas is None:
        use_pallas = total_bytes >= _SMALL_PROBLEM_BYTES
    if not use_pallas:
        return _ce_soft_label_xla(outputs, targets)

    c_pad = _round_up(c, 128)
    if class_tiled is None:
        # Class-tile only when even a 256-row full-C tile blows the VMEM budget.
        class_tiled = 16 * 256 * c_pad > _VMEM_INPUT_BUDGET

    if class_tiled:
        return _ce_soft_label_class_tiled(outputs, targets,
                                          block_n=block_n, block_c=block_c)
    return _ce_soft_label_single_pass(outputs, targets, block_n=block_n)


def ce_soft_label_ref(outputs, targets):
    return _ce_soft_label_xla(outputs, targets)


# TODO(synk): init_confidence / confidence_update are stateful EMA bookkeeping on a
# host-side buffer (one_hot + lerp); they are trivial jnp ops outside the forward
# pass and are not implemented as kernels here.


if __name__ == "__main__":
    key = jax.random.PRNGKey(0)
    k1, k2, k3, k4, k5, k6 = jax.random.split(key, 6)

    # 1) Tiny shape matching the module's typical use (batch=8, num_classes=32).
    N, C = 8, 32
    outputs = jax.random.normal(k1, (N, C), dtype=jnp.float32)
    targets = jax.nn.softmax(jax.random.normal(k2, (N, C), dtype=jnp.float32), axis=1)

    loss_auto = jax.block_until_ready(ce_soft_label(outputs, targets))          # small -> XLA path
    loss_pal = jax.block_until_ready(ce_soft_label(outputs, targets, use_pallas=True))  # Pallas path
    ref = ce_soft_label_ref(outputs, targets)
    assert loss_auto.shape == (N,) and loss_pal.shape == (N,)
    assert jnp.allclose(loss_auto, ref, atol=1e-4, rtol=1e-4)
    assert jnp.allclose(loss_pal, ref, atol=1e-4, rtol=1e-4)

    # 2) Pipelined single-pass kernel: N -> two 512-row tiles, C=160 -> padded to 256.
    N2, C2 = 1024, 160
    o2 = jax.random.normal(k3, (N2, C2), dtype=jnp.float32)
    t2 = jax.nn.softmax(jax.random.normal(k4, (N2, C2), dtype=jnp.float32), axis=1)
    l2 = jax.block_until_ready(ce_soft_label(o2, t2))
    assert jnp.allclose(l2, ce_soft_label_ref(o2, t2), atol=1e-4, rtol=1e-4)

    # 3) Class-tiled online-LSE path (auto-selected for vocab-scale C; forced here).
    N3, C3 = 256, 2500
    o3 = jax.random.normal(k5, (N3, C3), dtype=jnp.float32)
    t3 = jax.nn.softmax(jax.random.normal(k6, (N3, C3), dtype=jnp.float32), axis=1)
    l3 = jax.block_until_ready(ce_soft_label(o3, t3, class_tiled=True))
    assert jnp.allclose(l3, ce_soft_label_ref(o3, t3), atol=1e-4, rtol=1e-4)

    print("KERNEL_OK")
</pallas_src>

<mosaic_0001>
module attributes {stable_mosaic.version = 11 : i64} {
  func.func @_ce_single_pass_kernel(%arg0: i32, %arg1: memref<8x128xf32, #tpu.memory_space<vmem>>, %arg2: memref<8x128xf32, #tpu.memory_space<vmem>>, %arg3: memref<8x1xf32, #tpu.memory_space<vmem>>) attributes {dimension_semantics = [#tpu.dimension_semantics<parallel>], iteration_bounds = array<i64: 1>, scalar_prefetch = 0 : i64, scratch_operands = 0 : i64, tpu.core_type = #tpu.core_type<tc>, window_params = [{transform_indices = @transform_0, window_bounds = array<i64: 8, 128>}, {transform_indices = @transform_1, window_bounds = array<i64: 8, 128>}, {transform_indices = @transform_2, window_bounds = array<i64: 8, 1>}]} {
    %c0 = arith.constant 0 : index
    %c0_0 = arith.constant 0 : index
    %0 = vector.load %arg1[%c0, %c0_0] : memref<8x128xf32, #tpu.memory_space<vmem>>, vector<8x128xf32>
    %c0_1 = arith.constant 0 : index
    %c0_2 = arith.constant 0 : index
    %1 = vector.load %arg2[%c0_1, %c0_2] : memref<8x128xf32, #tpu.memory_space<vmem>>, vector<8x128xf32>
    %cst = arith.constant dense<0xFF800000> : vector<8xf32>
    %2 = vector.multi_reduction <maximumf>, %0, %cst [1] : vector<8x128xf32> to vector<8xf32>
    %3 = vector.shape_cast %2 : vector<8xf32> to vector<8x1xf32>
    %4 = vector.broadcast %3 : vector<8x1xf32> to vector<8x128xf32>
    %5 = arith.subf %0, %4 : vector<8x128xf32>
    %6 = math.exp %5 : vector<8x128xf32>
    %cst_3 = arith.constant dense<0.000000e+00> : vector<8xf32>
    %7 = vector.multi_reduction <add>, %6, %cst_3 [1] : vector<8x128xf32> to vector<8xf32>
    %8 = vector.shape_cast %7 : vector<8xf32> to vector<8x1xf32>
    %9 = math.log %8 : vector<8x1xf32>
    %10 = arith.addf %3, %9 : vector<8x1xf32>
    %11 = arith.mulf %0, %1 : vector<8x128xf32>
    %cst_4 = arith.constant dense<0.000000e+00> : vector<8xf32>
    %12 = vector.multi_reduction <add>, %11, %cst_4 [1] : vector<8x128xf32> to vector<8xf32>
    %13 = vector.shape_cast %12 : vector<8xf32> to vector<8x1xf32>
    %cst_5 = arith.constant dense<0.000000e+00> : vector<8xf32>
    %14 = vector.multi_reduction <add>, %1, %cst_5 [1] : vector<8x128xf32> to vector<8xf32>
    %15 = vector.shape_cast %14 : vector<8xf32> to vector<8x1xf32>
    %16 = arith.mulf %10, %15 : vector<8x1xf32>
    %17 = arith.subf %16, %13 : vector<8x1xf32>
    %c0_6 = arith.constant 0 : index
    %c0_7 = arith.constant 0 : index
    %18 = vector.load %arg3[%c0_6, %c0_7] : memref<8x1xf32, #tpu.memory_space<vmem>>, vector<8x1xf32>
    tpu.vector_store %arg3[%c0_6, %c0_7], %17 {strides = array<i32>} : memref<8x1xf32, #tpu.memory_space<vmem>>, vector<8x1xf32>,
    return
  }
  func.func @transform_0(%arg0: i32) -> (i32, i32) {
    %c0_i32 = arith.constant 0 : i32
    %c0_i32_0 = arith.constant 0 : i32
    return %arg0, %c0_i32 : i32, i32
  }
  func.func @transform_1(%arg0: i32) -> (i32, i32) {
    %c0_i32 = arith.constant 0 : i32
    %c0_i32_0 = arith.constant 0 : i32
    return %arg0, %c0_i32 : i32, i32
  }
  func.func @transform_2(%arg0: i32) -> (i32, i32) {
    %c0_i32 = arith.constant 0 : i32
    %c0_i32_0 = arith.constant 0 : i32
    return %arg0, %c0_i32 : i32, i32
  }
}

</mosaic_0001>

<llo_original>
// kernel: tpu_custom_call.1
$region0: #{tpu_custom_call.1}
  #allocation0 [shape = 'u32[]', space=smem, size = 0x4, offset = 0x4, fixed_abs, tag = 'smem constant byte address 0x4 - core index']
  #allocation1 [shape = 'u32[144,128]{1,0:T(1,128)}', space=vmem, size = 0x12000, scoped, tag = 'internal scratch']
  %s0 = inlined_call_operand.hbm [shape: f32[8,128], index: 0, kind: input, shape index: {}]
  %s1 = inlined_call_operand.hbm [shape: f32[8,128], index: 1, kind: input, shape index: {}]
  %s2 = inlined_call_operand.vmem [shape: f32[8,1], index: 2, kind: output, shape index: {}]
  %s3 = sld [smem:[#allocation0]]
  $region26: #{tpu_custom_call.1} parent=0
    _
  %s5 = ssub.s32 1, %s3
  %s6 = scalar_select 0, %s5, %s3
  $region1: #{tpu_custom_call.1} parent=0
    #allocation2 [shape = 'u8[4096]{0}', space=vmem, size = 0x1000, scoped, tag = 'input window, operand 0, single buffered']
    #allocation3 [shape = 's32[1]{0}', space=sflag, size = 0x4, scoped, tag = 'scoped memory for tpu_custom_call.1']
    #allocation4 [shape = 'u8[4096]{0}', space=vmem, size = 0x1000, scoped, tag = 'input window, operand 1, single buffered']
    #allocation5 [shape = 's32[1]{0}', space=sflag, size = 0x4, scoped, tag = 'scoped memory for tpu_custom_call.1']
    %7 = vsyncpa [#allocation3], 0
    %8 = vsyncpa [#allocation5], 0
    // Predicated region
    $region2: #{tpu_custom_call.1} parent=1 // pred_check
      _
    $region3: #{tpu_custom_call.1} parent=1 // pred_check_branch
      %10 = sbr.rel (0) target = $region5
    $region4: #{tpu_custom_call.1} parent=1 // pred_region
      %s12 = ssub.s32 128, 128
      %13 = vsyncadd [#allocation3], %s12
      %s15 = sshll.u32 [#allocation2], 4
      %s16 = int_to_ptr.vmem [resolvable:$true] %s15
      %18 = dma.hbm_to_vmem [thread:$0]  %s0, 128, %s16, [#allocation3]
    $region5: #{tpu_custom_call.1} parent=1 // pred_fallthru
      _
    // Predicated region
    $region6: #{tpu_custom_call.1} parent=1 // pred_check
      _
    $region7: #{tpu_custom_call.1} parent=1 // pred_check_branch
      %20 = sbr.rel (0) target = $region9
    $region8: #{tpu_custom_call.1} parent=1 // pred_region
      %s22 = ssub.s32 128, 128
      %23 = vsyncadd [#allocation5], %s22
      %s25 = sshll.u32 [#allocation4], 4
      %s26 = int_to_ptr.vmem [resolvable:$true] %s25
      %28 = dma.hbm_to_vmem [thread:$0]  %s1, 128, %s26, [#allocation5]
    $region9: #{tpu_custom_call.1} parent=1 // pred_fallthru
      _
    // Predicated region
    $region10: #{tpu_custom_call.1} parent=1 // pred_check
      _
    $region11: #{tpu_custom_call.1} parent=1 // pred_check_branch
      %30 = sbr.rel (0) target = $region13
    $region12: #{tpu_custom_call.1} parent=1 // pred_region
      %31 = dma.done [#allocation3], 128
    $region13: #{tpu_custom_call.1} parent=1 // pred_fallthru
      _
    // Predicated region
    $region14: #{tpu_custom_call.1} parent=1 // pred_check
      _
    $region15: #{tpu_custom_call.1} parent=1 // pred_check_branch
      %33 = sbr.rel (0) target = $region17
    $region16: #{tpu_custom_call.1} parent=1 // pred_region
      %34 = dma.done [#allocation5], 128
    $region17: #{tpu_custom_call.1} parent=1 // pred_fallthru
      _
    %v35 = vld [vmem:[#allocation2] sm:$0xff]
    %v36 = vld [vmem:[#allocation4] sm:$0xff]
    %37 = vmax.xlane.f32.xlu0 %v35
    %v38 = vpop.xlane.xlu0 %37
    %v39 = vsub.f32 %v35, %v38
    %v40 = vmul.f32 %v39, 1.442695
    %v41 = vpow.pop %v40
    %42 = vadd.xlane.f32.xlu0 %v41
    %v43 = vpop.xlane.xlu0 %42
    %v44 = vlog2.pop %v43
    %v45 = vmul.f32 %v44, 0.6931472
    %v46 = vadd.f32 %v38, %v45
    %v47 = vmul.f32 %v35, %v36
    %48 = vadd.xlane.f32.xlu0 %v47
    %v49 = vpop.xlane.xlu0 %48
    %50 = vadd.xlane.f32.xlu0 %v36
    %v51 = vpop.xlane.xlu0 %50
    %v52 = vmul.f32 %v46, %v51
    %v53 = vsub.f32 %v52, %v49
    %vm54 = vcmask 7168
    %55 = vst.msk [vmem:[%s2] sm:$0xff] %vm54, %v53
    // Predicated region
    $region18: #{tpu_custom_call.1} parent=1 // pred_check
      _
    $region19: #{tpu_custom_call.1} parent=1 // pred_check_branch
      %57 = sbr.rel (0) target = $region21
    $region20: #{tpu_custom_call.1} parent=1 // pred_region
      _
    $region21: #{tpu_custom_call.1} parent=1 // pred_fallthru
      _
    // Predicated region
    $region22: #{tpu_custom_call.1} parent=1 // pred_check
      _
    $region23: #{tpu_custom_call.1} parent=1 // pred_check_branch
      %59 = sbr.rel (0) target = $region25
    $region24: #{tpu_custom_call.1} parent=1 // pred_region
      _
    $region25: #{tpu_custom_call.1} parent=1 // pred_fallthru
      _
    %60 = vsyncpa [#allocation3], 1
    %61 = vsyncpa [#allocation5], 1

</llo_original>
